<compile_context>
chip_gen: v7x
topology: tpu7x:2x2x1
jax: 0.10.0
libtpu: 0.0.40
codegen_flags: <defaults>
</compile_context>

<pallas_src>
import functools

import jax
import jax.numpy as jnp
from jax.experimental import pallas as pl
from jax.experimental.pallas import tpu as pltpu


def _global_avg_pool_kernel(x_ref, o_ref, acc_ref, *, s_total, s_tile, inv_s,
                            mask_cols):
    """Accumulate row-sums of one (ROW_TILE, S_TILE) block into an f32 accumulator."""
    k = pl.program_id(1)

    @pl.when(k == 0)
    def _init():
        acc_ref[...] = jnp.zeros_like(acc_ref)

    x = x_ref[...].astype(jnp.float32)
    if mask_cols:
        # Last S-tile may run past the end of the reduction axis; zero the overrun.
        col = k * s_tile + jax.lax.broadcasted_iota(jnp.int32, x.shape, 1)
        x = jnp.where(col < s_total, x, 0.0)
    acc_ref[...] += jnp.sum(x, axis=-1, keepdims=True)

    @pl.when(k == pl.num_programs(1) - 1)
    def _finalize():
        o_ref[...] = (acc_ref[...] * inv_s).astype(o_ref.dtype)


def global_avg_pool(x):
    """x: (N, C, D, H, W) real array -> (N, C) per-channel global mean."""
    N, C, D, H, W = x.shape
    S = D * H * W
    rows = N * C

    itemsize = jnp.dtype(x.dtype).itemsize
    # Sublane packing: 8 rows for 4-byte dtypes, 16 for 2-byte, 32 for 1-byte.
    pack = max(8, 32 // itemsize)

    # Row tile: large enough to amortize the ~0.35us per-grid-step overhead,
    # a multiple of the sublane pack (or the whole row count when it is tiny,
    # which is legal because block dim == full array dim).
    if rows >= pack:
        row_tile = min(512, ((rows + pack - 1) // pack) * pack)
    else:
        row_tile = rows

    # Reduction tile: bound VMEM independently of S.  Budget ~8 MiB for the
    # double-buffered input block (2 x row_tile x s_tile x itemsize), which
    # fits comfortably on v5e (16 MiB scoped default), v6e and v7x (64 MiB).
    vmem_budget = 8 * 1024 * 1024
    max_s_tile = max(128, (vmem_budget // (2 * row_tile * itemsize)) // 128 * 128)
    if S <= max_s_tile:
        s_tile = S           # single reduction step; full-dim block, no mask
    else:
        s_tile = max_s_tile  # multiple of 128
    mask_cols = (S % s_tile) != 0

    grid = (pl.cdiv(rows, row_tile), pl.cdiv(S, s_tile))

    # No jnp.pad of the full input (would double HBM traffic): Pallas masks
    # boundary blocks, and garbage rows of the last partial row-tile are never
    # stored because their output rows are out of bounds.
    x2 = x.reshape(rows, S)

    kernel = functools.partial(
        _global_avg_pool_kernel,
        s_total=S, s_tile=s_tile, inv_s=float(1.0 / S), mask_cols=mask_cols)

    out = pl.pallas_call(
        kernel,
        out_shape=jax.ShapeDtypeStruct((rows, 1), x.dtype),
        grid_spec=pltpu.PrefetchScalarGridSpec(
            num_scalar_prefetch=0,
            grid=grid,
            in_specs=[pl.BlockSpec((row_tile, s_tile), lambda i, k: (i, k))],
            out_specs=pl.BlockSpec((row_tile, 1), lambda i, k: (i, 0)),
            scratch_shapes=[pltpu.VMEM((row_tile, 1), jnp.float32)],
        ),
        compiler_params=pltpu.CompilerParams(
            # Row axis parallel (megacore sharding on v7x), reduction axis last
            # and "arbitrary" so the resident accumulator is carried across k.
            dimension_semantics=("parallel", "arbitrary"),
            vmem_limit_bytes=32 * 1024 * 1024,
        ),
    )(x2)

    return out.reshape(N, C)


if __name__ == "__main__":
    key = jax.random.PRNGKey(0)
    # Small 5-D input consistent with the module: (N, C, D, H, W)
    N, C, D, H, W = 2, 4, 8, 8, 8
    x = jax.random.normal(key, (N, C, D, H, W), dtype=jnp.float32)

    y = global_avg_pool(x)
    y = jax.block_until_ready(y)

    # Reference check in plain JAX.
    y_ref = jnp.mean(x, axis=(2, 3, 4))
    assert y.shape == (N, C)
    assert jnp.allclose(y, y_ref, rtol=1e-5, atol=1e-5), "mismatch vs reference"

    print("KERNEL_OK")
</pallas_src>

<mosaic_0001>
module attributes {stable_mosaic.version = 11 : i64} {
  func.func @_global_avg_pool_kernel(%arg0: i32, %arg1: i32, %arg2: memref<8x512xf32, #tpu.memory_space<vmem>>, %arg3: memref<8x1xf32, #tpu.memory_space<vmem>>, %arg4: memref<8x1xf32, #tpu.memory_space<vmem>>) attributes {dimension_semantics = [#tpu.dimension_semantics<parallel>, #tpu.dimension_semantics<arbitrary>], iteration_bounds = array<i64: 1, 1>, scalar_prefetch = 0 : i64, scratch_operands = 1 : i64, tpu.core_type = #tpu.core_type<tc>, window_params = [{transform_indices = @transform_0, window_bounds = array<i64: 8, 512>}, {transform_indices = @transform_1, window_bounds = array<i64: 8, 1>}]} {
    %c0_i32 = arith.constant 0 : i32
    %0 = arith.cmpi eq, %arg1, %c0_i32 : i32
    %1 = arith.extui %0 : i1 to i32
    %c0_i32_0 = arith.constant 0 : i32
    %2 = arith.cmpi ne, %1, %c0_i32_0 : i32
    scf.if %2 {
      %cst_8 = arith.constant 0.000000e+00 : f32
      %12 = vector.broadcast %cst_8 : f32 to vector<8x1xf32>
      %c0_9 = arith.constant 0 : index
      %c0_10 = arith.constant 0 : index
      %13 = vector.load %arg4[%c0_9, %c0_10] : memref<8x1xf32, #tpu.memory_space<vmem>>, vector<8x1xf32>
      tpu.vector_store %arg4[%c0_9, %c0_10], %12 {strides = array<i32>} : memref<8x1xf32, #tpu.memory_space<vmem>>, vector<8x1xf32>,
    } else {
    }
    %c0 = arith.constant 0 : index
    %c0_1 = arith.constant 0 : index
    %3 = vector.load %arg2[%c0, %c0_1] : memref<8x512xf32, #tpu.memory_space<vmem>>, vector<8x512xf32>
    %c0_2 = arith.constant 0 : index
    %c0_3 = arith.constant 0 : index
    %4 = vector.load %arg4[%c0_2, %c0_3] : memref<8x1xf32, #tpu.memory_space<vmem>>, vector<8x1xf32>
    %cst = arith.constant dense<0.000000e+00> : vector<8xf32>
    %5 = vector.multi_reduction <add>, %3, %cst [1] : vector<8x512xf32> to vector<8xf32>
    %6 = vector.shape_cast %5 : vector<8xf32> to vector<8x1xf32>
    %7 = arith.addf %4, %6 : vector<8x1xf32>
    %c0_4 = arith.constant 0 : index
    %c0_5 = arith.constant 0 : index
    %8 = vector.load %arg4[%c0_4, %c0_5] : memref<8x1xf32, #tpu.memory_space<vmem>>, vector<8x1xf32>
    tpu.vector_store %arg4[%c0_4, %c0_5], %7 {strides = array<i32>} : memref<8x1xf32, #tpu.memory_space<vmem>>, vector<8x1xf32>,
    %c0_i32_6 = arith.constant 0 : i32
    %9 = arith.cmpi eq, %arg1, %c0_i32_6 : i32
    %10 = arith.extui %9 : i1 to i32
    %c0_i32_7 = arith.constant 0 : i32
    %11 = arith.cmpi ne, %10, %c0_i32_7 : i32
    scf.if %11 {
      %c0_8 = arith.constant 0 : index
      %c0_9 = arith.constant 0 : index
      %12 = vector.load %arg4[%c0_8, %c0_9] : memref<8x1xf32, #tpu.memory_space<vmem>>, vector<8x1xf32>
      %cst_10 = arith.constant 0.001953125 : f32
      %13 = vector.broadcast %cst_10 : f32 to vector<8x1xf32>
      %14 = arith.mulf %12, %13 : vector<8x1xf32>
      %c0_11 = arith.constant 0 : index
      %c0_12 = arith.constant 0 : index
      %15 = vector.load %arg3[%c0_11, %c0_12] : memref<8x1xf32, #tpu.memory_space<vmem>>, vector<8x1xf32>
      tpu.vector_store %arg3[%c0_11, %c0_12], %14 {strides = array<i32>} : memref<8x1xf32, #tpu.memory_space<vmem>>, vector<8x1xf32>,
    } else {
    }
    return
  }
  func.func @transform_0(%arg0: i32, %arg1: i32) -> (i32, i32) {
    %c0_i32 = arith.constant 0 : i32
    return %arg0, %arg1 : i32, i32
  }
  func.func @transform_1(%arg0: i32, %arg1: i32) -> (i32, i32) {
    %c0_i32 = arith.constant 0 : i32
    %c0_i32_0 = arith.constant 0 : i32
    return %arg0, %c0_i32 : i32, i32
  }
}

</mosaic_0001>

<llo_original>
// kernel: tpu_custom_call.1
$region0: #{tpu_custom_call.1}
  #allocation0 [shape = 'u32[]', space=smem, size = 0x4, offset = 0x4, fixed_abs, tag = 'smem constant byte address 0x4 - core index']
  #allocation1 [shape = 'u32[144,128]{1,0:T(1,128)}', space=vmem, size = 0x12000, scoped, tag = 'internal scratch']
  #allocation2 [shape = 'f32[8,1]{1,0:T(8,128)}', space=vmem, size = 0x1000, scoped, tag = 'scratch operand']
  %s0 = inlined_call_operand.hbm [shape: f32[8,512], index: 0, kind: input, shape index: {}]
  %s1 = inlined_call_operand.vmem [shape: f32[8,1], index: 1, kind: output, shape index: {}]
  %s2 = sld [smem:[#allocation0]]
  $region26: #{tpu_custom_call.1} parent=0
    _
  %s4 = ssub.s32 1, %s2
  %s5 = scalar_select 0, %s4, %s2
  $region1: #{tpu_custom_call.1} parent=0
    #allocation3 [shape = 'u8[16384]{0}', space=vmem, size = 0x4000, scoped, tag = 'input window, operand 0, single buffered']
    #allocation4 [shape = 's32[1]{0}', space=sflag, size = 0x4, scoped, tag = 'scoped memory for tpu_custom_call.1']
    %6 = vsyncpa [#allocation4], 0
    // Predicated region
    $region2: #{tpu_custom_call.1} parent=1 // pred_check
      _
    $region3: #{tpu_custom_call.1} parent=1 // pred_check_branch
      %8 = sbr.rel (0) target = $region5
    $region4: #{tpu_custom_call.1} parent=1 // pred_region
      %s10 = ssub.s32 512, 512
      %11 = vsyncadd [#allocation4], %s10
      %s13 = sshll.u32 [#allocation3], 4
      %s14 = int_to_ptr.vmem [resolvable:$true] %s13
      %16 = dma.hbm_to_vmem [thread:$0]  %s0, 512, %s14, [#allocation4]
    $region5: #{tpu_custom_call.1} parent=1 // pred_fallthru
      _
    // Predicated region
    $region6: #{tpu_custom_call.1} parent=1 // pred_check
      _
    $region7: #{tpu_custom_call.1} parent=1 // pred_check_branch
      %18 = sbr.rel (0) target = $region9
    $region8: #{tpu_custom_call.1} parent=1 // pred_region
      %19 = dma.done [#allocation4], 512
    $region9: #{tpu_custom_call.1} parent=1 // pred_fallthru
      _
    %p20 = scmp.eq.s32.totalorder 0, 0
    // Predicated region
    $region10: #{tpu_custom_call.1} parent=1 // pred_check
      %p21 = pneg %p20
    $region11: #{tpu_custom_call.1} parent=1 // pred_check_branch
      %23 = sbr.rel (%p21) target = $region13
    $region12: #{tpu_custom_call.1} parent=1 // pred_region
      %vm24 = vcmask 7168
      %25 = vst.msk [vmem:[#allocation2] sm:$0xff] %vm24, 0.0
    $region13: #{tpu_custom_call.1} parent=1 // pred_fallthru
      _
    %v26 = vld [vmem:[#allocation3] sm:$0xff]
    %v27 = vld [vmem:[#allocation3 + $0x8] sm:$0xff]
    %v28 = vld [vmem:[#allocation3 + $0x10] sm:$0xff]
    %v29 = vld [vmem:[#allocation3 + $0x18] sm:$0xff]
    %v30 = vld [vmem:[#allocation2] sm:$0xff]
    %v31 = vadd.f32 %v26, %v27
    %v32 = vadd.f32 %v31, %v28
    %v33 = vadd.f32 %v32, %v29
    %34 = vadd.xlane.f32.xlu0 %v33
    %v35 = vpop.xlane.xlu0 %34
    %v36 = vadd.f32 %v30, %v35
    %vm37 = vcmask 7168
    %38 = vst.msk [vmem:[#allocation2] sm:$0xff] %vm37, %v36
    // Predicated region
    $region14: #{tpu_custom_call.1} parent=1 // pred_check
      %p39 = pneg %p20
    $region15: #{tpu_custom_call.1} parent=1 // pred_check_branch
      %41 = sbr.rel (%p39) target = $region17
    $region16: #{tpu_custom_call.1} parent=1 // pred_region
      %v42 = vld [vmem:[#allocation2] sm:$0xff]
      %v43 = vmul.f32 %v42, 0.001953125
      %44 = vst.msk [vmem:[%s1] sm:$0xff] %vm37, %v43
    $region17: #{tpu_custom_call.1} parent=1 // pred_fallthru
      _
    // Predicated region
    $region18: #{tpu_custom_call.1} parent=1 // pred_check
      _
    $region19: #{tpu_custom_call.1} parent=1 // pred_check_branch
      %46 = sbr.rel (0) target = $region21
    $region20: #{tpu_custom_call.1} parent=1 // pred_region
      _
    $region21: #{tpu_custom_call.1} parent=1 // pred_fallthru
      _
    // Predicated region
    $region22: #{tpu_custom_call.1} parent=1 // pred_check
      _
    $region23: #{tpu_custom_call.1} parent=1 // pred_check_branch
      %48 = sbr.rel (0) target = $region25
    $region24: #{tpu_custom_call.1} parent=1 // pred_region
      _
    $region25: #{tpu_custom_call.1} parent=1 // pred_fallthru
      _
    %49 = vsyncpa [#allocation4], 1

</llo_original>
